<compile_context>
chip_gen: v6e
topology: v6e:2x2x1
jax: 0.10.0
libtpu: 0.0.40
codegen_flags: <defaults>
</compile_context>

<pallas_src>
import functools

import jax
import jax.numpy as jnp
import numpy as np
from jax.experimental import pallas as pl
from jax.experimental.pallas import tpu as pltpu

_LANE = 128
_LOG10_SCALE = float(10.0 / np.log(10.0))  # 10*log10(x) == _LOG10_SCALE * ln(x)


def _round_up(x, m):
    return ((x + m - 1) // m) * m


def _cdiv(a, b):
    return -(-a // b)


def _choose_block(n_rows, t_len, itemsize, target_bytes=2 * 1024 * 1024):
    """Pick (tm, tt) so one input block is ~target_bytes and obeys TPU tiling.

    tm (rows, sublanes) is a multiple of the dtype sublane packing; tt (lanes)
    is either the full T (no reduction tiling) or a multiple of 128.
    """
    row_mult = max(8, 32 // itemsize)  # f32 -> 8, bf16 -> 16, int8/fp8 -> 32
    full_row_bytes = t_len * itemsize
    if row_mult * full_row_bytes <= target_bytes:
        # No T tiling: take full rows, as many as fit the target block size.
        tt = t_len
        tm = (target_bytes // max(full_row_bytes, 1)) // row_mult * row_mult
        tm = max(row_mult, min(tm, _round_up(n_rows, row_mult)))
    else:
        # Tile the reduction axis; keep the last dim a multiple of 128 lanes
        # and split T evenly so padding overhead stays < 128 per tile.
        tm = row_mult
        t128 = _round_up(t_len, _LANE)
        tt_target = max(_LANE, (target_bytes // (row_mult * itemsize)) // _LANE * _LANE)
        num_t = _cdiv(t128, tt_target)
        tt = _round_up(_cdiv(t128, num_t), _LANE)
    return tm, tt


def _sisdr_kernel(o_ref, t_ref, out_ref, s_ot_ref, s_tt_ref, s_oo_ref, *, eps):
    kt = pl.program_id(1)

    @pl.when(kt == 0)
    def _():
        s_ot_ref[...] = jnp.zeros_like(s_ot_ref)
        s_tt_ref[...] = jnp.zeros_like(s_tt_ref)
        s_oo_ref[...] = jnp.zeros_like(s_oo_ref)

    o = o_ref[...].astype(jnp.float32)  # (TM, TT)
    t = t_ref[...].astype(jnp.float32)  # (TM, TT)

    # Single elementwise pass over the tile; three fused lane reductions.
    s_ot_ref[...] += jnp.sum(o * t, axis=1, keepdims=True)
    s_tt_ref[...] += jnp.sum(t * t, axis=1, keepdims=True)
    s_oo_ref[...] += jnp.sum(o * o, axis=1, keepdims=True)

    @pl.when(kt == pl.num_programs(1) - 1)
    def _():
        s_ot = s_ot_ref[...]
        s_tt = s_tt_ref[...]
        s_oo = s_oo_ref[...]
        alpha = s_ot / (s_tt + eps)
        a2_tt = alpha * alpha * s_tt
        target_energy = a2_tt                                   # sum((alpha*t)^2)
        noise_energy = s_oo - 2.0 * alpha * s_ot + a2_tt        # sum((o-alpha*t)^2)
        # Guard against f32 cancellation when o ~= alpha*t (keeps log finite).
        noise_energy = jnp.maximum(noise_energy, 0.0)
        si_sdr = _LOG10_SCALE * (
            jnp.log(target_energy + eps) - jnp.log(noise_energy + eps)
        )
        out_ref[...] = si_sdr  # all-zero (padded) rows yield exactly 0 here


def sisdr_loss(outputs, targets, eps=1e-8):
    assert outputs.shape == targets.shape, "Target and estimate must have the same shape"
    t_len = outputs.shape[-1]
    n_rows = int(np.prod(outputs.shape[:-1]))  # = prod(leading dims) * freq bins

    o = outputs.reshape(n_rows, t_len)
    t = targets.reshape(n_rows, t_len)

    itemsize = jnp.dtype(outputs.dtype).itemsize
    tm, tt = _choose_block(n_rows, t_len, itemsize)
    n_pad = _round_up(n_rows, tm)
    t_pad = _round_up(t_len, tt)
    if (n_pad, t_pad) != (n_rows, t_len):
        # Zero padding contributes 0 to every partial sum and si_sdr == 0 on
        # all-zero rows, so the final sum is unaffected.
        o = jnp.pad(o, ((0, n_pad - n_rows), (0, t_pad - t_len)))
        t = jnp.pad(t, ((0, n_pad - n_rows), (0, t_pad - t_len)))

    grid = (n_pad // tm, t_pad // tt)
    kernel = functools.partial(_sisdr_kernel, eps=float(eps))

    per_row = pl.pallas_call(
        kernel,
        out_shape=jax.ShapeDtypeStruct((n_pad, 1), jnp.float32),
        grid_spec=pltpu.PrefetchScalarGridSpec(
            num_scalar_prefetch=0,
            grid=grid,
            in_specs=[
                pl.BlockSpec((tm, tt), lambda i, k: (i, k)),
                pl.BlockSpec((tm, tt), lambda i, k: (i, k)),
            ],
            out_specs=pl.BlockSpec((tm, 1), lambda i, k: (i, 0)),
            scratch_shapes=[pltpu.VMEM((tm, 1), jnp.float32)] * 3,
        ),
        compiler_params=pltpu.CompilerParams(
            # Row blocks are independent -> parallel (v7x 2 TCs both contribute
            # HBM bandwidth); the T reduction is carried in scratch -> arbitrary.
            dimension_semantics=("parallel", "arbitrary"),
            # ~2 MiB/input block, double-buffered x2 inputs ~= 9 MiB << limit;
            # sized for the smallest generation (v7x: 64 MiB physical VMEM).
            vmem_limit_bytes=32 * 1024 * 1024,
        ),
    )(o, t)

    return -(jnp.sum(per_row) / float(n_rows))


def _sisdr_ref(outputs, targets, eps=1e-8):
    R, T = outputs.shape[-2], outputs.shape[-1]
    o = outputs.reshape(-1, R, T).astype(jnp.float32)
    t = targets.reshape(-1, R, T).astype(jnp.float32)
    dot = jnp.sum(t * o, axis=2, keepdims=True)
    et = jnp.sum(t ** 2, axis=2, keepdims=True)
    alpha = dot / (et + eps)
    st = alpha * t
    en = o - st
    te = jnp.sum(st ** 2, axis=2)
    ne = jnp.sum(en ** 2, axis=2)
    si = 10.0 * jnp.log10((te + eps) / (ne + eps))
    return -jnp.mean(si)


if __name__ == "__main__":
    key = jax.random.PRNGKey(0)
    k1, k2 = jax.random.split(key)
    # magnitude-spectrogram-like positive inputs, shape (batch, channels, F, T)
    outputs = jnp.abs(jax.random.normal(k1, (2, 4, 16, 16), dtype=jnp.float32))
    targets = jnp.abs(jax.random.normal(k2, (2, 4, 16, 16), dtype=jnp.float32))

    loss = sisdr_loss(outputs, targets)
    jax.block_until_ready(loss)

    ref = _sisdr_ref(outputs, targets)
    np.testing.assert_allclose(np.asarray(loss), np.asarray(ref), rtol=1e-5, atol=1e-5)

    print("KERNEL_OK")
</pallas_src>

<mosaic_0001>
module attributes {stable_mosaic.version = 11 : i64} {
  func.func @_sisdr_kernel(%arg0: i32, %arg1: i32, %arg2: memref<128x16xf32, #tpu.memory_space<vmem>>, %arg3: memref<128x16xf32, #tpu.memory_space<vmem>>, %arg4: memref<128x1xf32, #tpu.memory_space<vmem>>, %arg5: memref<128x1xf32, #tpu.memory_space<vmem>>, %arg6: memref<128x1xf32, #tpu.memory_space<vmem>>, %arg7: memref<128x1xf32, #tpu.memory_space<vmem>>) attributes {dimension_semantics = [#tpu.dimension_semantics<parallel>, #tpu.dimension_semantics<arbitrary>], iteration_bounds = array<i64: 1, 1>, scalar_prefetch = 0 : i64, scratch_operands = 3 : i64, tpu.core_type = #tpu.core_type<tc>, window_params = [{transform_indices = @transform_0, window_bounds = array<i64: 128, 16>}, {transform_indices = @transform_1, window_bounds = array<i64: 128, 16>}, {transform_indices = @transform_2, window_bounds = array<i64: 128, 1>}]} {
    %c0_i32 = arith.constant 0 : i32
    %0 = arith.cmpi eq, %arg1, %c0_i32 : i32
    %1 = arith.extui %0 : i1 to i32
    %c0_i32_0 = arith.constant 0 : i32
    %2 = arith.cmpi ne, %1, %c0_i32_0 : i32
    scf.if %2 {
      %cst_20 = arith.constant 0.000000e+00 : f32
      %26 = vector.broadcast %cst_20 : f32 to vector<128x1xf32>
      %c0_21 = arith.constant 0 : index
      %c0_22 = arith.constant 0 : index
      %27 = vector.load %arg5[%c0_21, %c0_22] : memref<128x1xf32, #tpu.memory_space<vmem>>, vector<128x1xf32>
      tpu.vector_store %arg5[%c0_21, %c0_22], %26 {strides = array<i32>} : memref<128x1xf32, #tpu.memory_space<vmem>>, vector<128x1xf32>,
      %cst_23 = arith.constant 0.000000e+00 : f32
      %28 = vector.broadcast %cst_23 : f32 to vector<128x1xf32>
      %c0_24 = arith.constant 0 : index
      %c0_25 = arith.constant 0 : index
      %29 = vector.load %arg6[%c0_24, %c0_25] : memref<128x1xf32, #tpu.memory_space<vmem>>, vector<128x1xf32>
      tpu.vector_store %arg6[%c0_24, %c0_25], %28 {strides = array<i32>} : memref<128x1xf32, #tpu.memory_space<vmem>>, vector<128x1xf32>,
      %cst_26 = arith.constant 0.000000e+00 : f32
      %30 = vector.broadcast %cst_26 : f32 to vector<128x1xf32>
      %c0_27 = arith.constant 0 : index
      %c0_28 = arith.constant 0 : index
      %31 = vector.load %arg7[%c0_27, %c0_28] : memref<128x1xf32, #tpu.memory_space<vmem>>, vector<128x1xf32>
      tpu.vector_store %arg7[%c0_27, %c0_28], %30 {strides = array<i32>} : memref<128x1xf32, #tpu.memory_space<vmem>>, vector<128x1xf32>,
    } else {
    }
    %c0 = arith.constant 0 : index
    %c0_1 = arith.constant 0 : index
    %3 = vector.load %arg2[%c0, %c0_1] : memref<128x16xf32, #tpu.memory_space<vmem>>, vector<128x16xf32>
    %c0_2 = arith.constant 0 : index
    %c0_3 = arith.constant 0 : index
    %4 = vector.load %arg3[%c0_2, %c0_3] : memref<128x16xf32, #tpu.memory_space<vmem>>, vector<128x16xf32>
    %c0_4 = arith.constant 0 : index
    %c0_5 = arith.constant 0 : index
    %5 = vector.load %arg5[%c0_4, %c0_5] : memref<128x1xf32, #tpu.memory_space<vmem>>, vector<128x1xf32>
    %6 = arith.mulf %3, %4 : vector<128x16xf32>
    %cst = arith.constant dense<0.000000e+00> : vector<128xf32>
    %7 = vector.multi_reduction <add>, %6, %cst [1] : vector<128x16xf32> to vector<128xf32>
    %8 = vector.shape_cast %7 : vector<128xf32> to vector<128x1xf32>
    %9 = arith.addf %5, %8 : vector<128x1xf32>
    %c0_6 = arith.constant 0 : index
    %c0_7 = arith.constant 0 : index
    %10 = vector.load %arg5[%c0_6, %c0_7] : memref<128x1xf32, #tpu.memory_space<vmem>>, vector<128x1xf32>
    tpu.vector_store %arg5[%c0_6, %c0_7], %9 {strides = array<i32>} : memref<128x1xf32, #tpu.memory_space<vmem>>, vector<128x1xf32>,
    %c0_8 = arith.constant 0 : index
    %c0_9 = arith.constant 0 : index
    %11 = vector.load %arg6[%c0_8, %c0_9] : memref<128x1xf32, #tpu.memory_space<vmem>>, vector<128x1xf32>
    %12 = arith.mulf %4, %4 : vector<128x16xf32>
    %cst_10 = arith.constant dense<0.000000e+00> : vector<128xf32>
    %13 = vector.multi_reduction <add>, %12, %cst_10 [1] : vector<128x16xf32> to vector<128xf32>
    %14 = vector.shape_cast %13 : vector<128xf32> to vector<128x1xf32>
    %15 = arith.addf %11, %14 : vector<128x1xf32>
    %c0_11 = arith.constant 0 : index
    %c0_12 = arith.constant 0 : index
    %16 = vector.load %arg6[%c0_11, %c0_12] : memref<128x1xf32, #tpu.memory_space<vmem>>, vector<128x1xf32>
    tpu.vector_store %arg6[%c0_11, %c0_12], %15 {strides = array<i32>} : memref<128x1xf32, #tpu.memory_space<vmem>>, vector<128x1xf32>,
    %c0_13 = arith.constant 0 : index
    %c0_14 = arith.constant 0 : index
    %17 = vector.load %arg7[%c0_13, %c0_14] : memref<128x1xf32, #tpu.memory_space<vmem>>, vector<128x1xf32>
    %18 = arith.mulf %3, %3 : vector<128x16xf32>
    %cst_15 = arith.constant dense<0.000000e+00> : vector<128xf32>
    %19 = vector.multi_reduction <add>, %18, %cst_15 [1] : vector<128x16xf32> to vector<128xf32>
    %20 = vector.shape_cast %19 : vector<128xf32> to vector<128x1xf32>
    %21 = arith.addf %17, %20 : vector<128x1xf32>
    %c0_16 = arith.constant 0 : index
    %c0_17 = arith.constant 0 : index
    %22 = vector.load %arg7[%c0_16, %c0_17] : memref<128x1xf32, #tpu.memory_space<vmem>>, vector<128x1xf32>
    tpu.vector_store %arg7[%c0_16, %c0_17], %21 {strides = array<i32>} : memref<128x1xf32, #tpu.memory_space<vmem>>, vector<128x1xf32>,
    %c0_i32_18 = arith.constant 0 : i32
    %23 = arith.cmpi eq, %arg1, %c0_i32_18 : i32
    %24 = arith.extui %23 : i1 to i32
    %c0_i32_19 = arith.constant 0 : i32
    %25 = arith.cmpi ne, %24, %c0_i32_19 : i32
    scf.if %25 {
      %c0_20 = arith.constant 0 : index
      %c0_21 = arith.constant 0 : index
      %26 = vector.load %arg5[%c0_20, %c0_21] : memref<128x1xf32, #tpu.memory_space<vmem>>, vector<128x1xf32>
      %c0_22 = arith.constant 0 : index
      %c0_23 = arith.constant 0 : index
      %27 = vector.load %arg6[%c0_22, %c0_23] : memref<128x1xf32, #tpu.memory_space<vmem>>, vector<128x1xf32>
      %c0_24 = arith.constant 0 : index
      %c0_25 = arith.constant 0 : index
      %28 = vector.load %arg7[%c0_24, %c0_25] : memref<128x1xf32, #tpu.memory_space<vmem>>, vector<128x1xf32>
      %cst_26 = arith.constant 9.99999993E-9 : f32
      %29 = vector.broadcast %cst_26 : f32 to vector<128x1xf32>
      %30 = arith.addf %27, %29 : vector<128x1xf32>
      %31 = arith.divf %26, %30 : vector<128x1xf32>
      %32 = arith.mulf %31, %31 : vector<128x1xf32>
      %33 = arith.mulf %32, %27 : vector<128x1xf32>
      %cst_27 = arith.constant 2.000000e+00 : f32
      %34 = vector.broadcast %cst_27 : f32 to vector<128x1xf32>
      %35 = arith.mulf %34, %31 : vector<128x1xf32>
      %36 = arith.mulf %35, %26 : vector<128x1xf32>
      %37 = arith.subf %28, %36 : vector<128x1xf32>
      %38 = arith.addf %37, %33 : vector<128x1xf32>
      %cst_28 = arith.constant 0.000000e+00 : f32
      %39 = vector.broadcast %cst_28 : f32 to vector<128x1xf32>
      %40 = arith.maximumf %38, %39 : vector<128x1xf32>
      %cst_29 = arith.constant 9.99999993E-9 : f32
      %41 = vector.broadcast %cst_29 : f32 to vector<128x1xf32>
      %42 = arith.addf %33, %41 : vector<128x1xf32>
      %43 = math.log %42 : vector<128x1xf32>
      %cst_30 = arith.constant 9.99999993E-9 : f32
      %44 = vector.broadcast %cst_30 : f32 to vector<128x1xf32>
      %45 = arith.addf %40, %44 : vector<128x1xf32>
      %46 = math.log %45 : vector<128x1xf32>
      %47 = arith.subf %43, %46 : vector<128x1xf32>
      %cst_31 = arith.constant 4.34294462 : f32
      %48 = vector.broadcast %cst_31 : f32 to vector<128x1xf32>
      %49 = arith.mulf %48, %47 : vector<128x1xf32>
      %c0_32 = arith.constant 0 : index
      %c0_33 = arith.constant 0 : index
      %50 = vector.load %arg4[%c0_32, %c0_33] : memref<128x1xf32, #tpu.memory_space<vmem>>, vector<128x1xf32>
      tpu.vector_store %arg4[%c0_32, %c0_33], %49 {strides = array<i32>} : memref<128x1xf32, #tpu.memory_space<vmem>>, vector<128x1xf32>,
    } else {
    }
    return
  }
  func.func @transform_0(%arg0: i32, %arg1: i32) -> (i32, i32) {
    %c0_i32 = arith.constant 0 : i32
    return %arg0, %arg1 : i32, i32
  }
  func.func @transform_1(%arg0: i32, %arg1: i32) -> (i32, i32) {
    %c0_i32 = arith.constant 0 : i32
    return %arg0, %arg1 : i32, i32
  }
  func.func @transform_2(%arg0: i32, %arg1: i32) -> (i32, i32) {
    %c0_i32 = arith.constant 0 : i32
    %c0_i32_0 = arith.constant 0 : i32
    return %arg0, %c0_i32 : i32, i32
  }
}

</mosaic_0001>

<llo_original>
// kernel: tpu_custom_call.1
$region0: #{tpu_custom_call.1}
  #allocation0 [shape = 'u32[]', space=smem, size = 0x4, offset = 0x4, fixed_abs, tag = 'smem constant byte address 0x4 - core index']
  #allocation1 [shape = 'u32[144,128]{1,0:T(1,128)}', space=vmem, size = 0x12000, scoped, tag = 'internal scratch']
  #allocation2 [shape = 'f32[128,1]{1,0:T(8,128)}', space=vmem, size = 0x10000, scoped, tag = 'scratch operand']
  #allocation3 [shape = 'f32[128,1]{1,0:T(8,128)}', space=vmem, size = 0x10000, scoped, tag = 'scratch operand']
  #allocation4 [shape = 'f32[128,1]{1,0:T(8,128)}', space=vmem, size = 0x10000, scoped, tag = 'scratch operand']
  %s0 = inlined_call_operand.vmem [shape: f32[128,16], index: 0, kind: input, shape index: {}]
  %s1 = inlined_call_operand.vmem [shape: f32[128,16], index: 1, kind: input, shape index: {}]
  %s2 = inlined_call_operand.vmem [shape: f32[128,1], index: 2, kind: output, shape index: {}]
  %s3 = sld [smem:[#allocation0]]
  $region26: #{tpu_custom_call.1} parent=0
    _
  %s5 = ssub.s32 1, %s3
  %s6 = scalar_select 0, %s5, %s3
  // Predicated region
  $region2: #{tpu_custom_call.1} parent=0 // pred_check
    _
  $region3: #{tpu_custom_call.1} parent=0 // pred_check_branch
    %8 = sbr.rel (0) target = $region5
  $region4: #{tpu_custom_call.1} parent=0 // pred_region
    _
  $region5: #{tpu_custom_call.1} parent=0 // pred_fallthru
    _
  // Predicated region
  $region6: #{tpu_custom_call.1} parent=0 // pred_check
    _
  $region7: #{tpu_custom_call.1} parent=0 // pred_check_branch
    %10 = sbr.rel (0) target = $region9
  $region8: #{tpu_custom_call.1} parent=0 // pred_region
    _
  $region9: #{tpu_custom_call.1} parent=0 // pred_fallthru
    _
  %p11 = scmp.eq.s32.totalorder 0, 0
  // Predicated region
  $region10: #{tpu_custom_call.1} parent=0 // pred_check
    %p12 = pneg %p11
  $region11: #{tpu_custom_call.1} parent=0 // pred_check_branch
    %14 = sbr.rel (%p12) target = $region13
  $region12: #{tpu_custom_call.1} parent=0 // pred_region
    %vm15 = vcmask 7168
    %16 = vst.msk [vmem:[#allocation2] sm:$0xff] %vm15, 0.0
    %17 = vst.msk [vmem:[#allocation2 + $0x8] sm:$0xff] %vm15, 0.0
    %18 = vst.msk [vmem:[#allocation2 + $0x10] sm:$0xff] %vm15, 0.0
    %19 = vst.msk [vmem:[#allocation2 + $0x18] sm:$0xff] %vm15, 0.0
    %20 = vst.msk [vmem:[#allocation2 + $0x20] sm:$0xff] %vm15, 0.0
    %21 = vst.msk [vmem:[#allocation2 + $0x28] sm:$0xff] %vm15, 0.0
    %22 = vst.msk [vmem:[#allocation2 + $0x30] sm:$0xff] %vm15, 0.0
    %23 = vst.msk [vmem:[#allocation2 + $0x38] sm:$0xff] %vm15, 0.0
    %24 = vst.msk [vmem:[#allocation2 + $0x40] sm:$0xff] %vm15, 0.0
    %25 = vst.msk [vmem:[#allocation2 + $0x48] sm:$0xff] %vm15, 0.0
    %26 = vst.msk [vmem:[#allocation2 + $0x50] sm:$0xff] %vm15, 0.0
    %27 = vst.msk [vmem:[#allocation2 + $0x58] sm:$0xff] %vm15, 0.0
    %28 = vst.msk [vmem:[#allocation2 + $0x60] sm:$0xff] %vm15, 0.0
    %29 = vst.msk [vmem:[#allocation2 + $0x68] sm:$0xff] %vm15, 0.0
    %30 = vst.msk [vmem:[#allocation2 + $0x70] sm:$0xff] %vm15, 0.0
    %31 = vst.msk [vmem:[#allocation2 + $0x78] sm:$0xff] %vm15, 0.0
    %32 = vst.msk [vmem:[#allocation3] sm:$0xff] %vm15, 0.0
    %33 = vst.msk [vmem:[#allocation3 + $0x8] sm:$0xff] %vm15, 0.0
    %34 = vst.msk [vmem:[#allocation3 + $0x10] sm:$0xff] %vm15, 0.0
    %35 = vst.msk [vmem:[#allocation3 + $0x18] sm:$0xff] %vm15, 0.0
    %36 = vst.msk [vmem:[#allocation3 + $0x20] sm:$0xff] %vm15, 0.0
    %37 = vst.msk [vmem:[#allocation3 + $0x28] sm:$0xff] %vm15, 0.0
    %38 = vst.msk [vmem:[#allocation3 + $0x30] sm:$0xff] %vm15, 0.0
    %39 = vst.msk [vmem:[#allocation3 + $0x38] sm:$0xff] %vm15, 0.0
    %40 = vst.msk [vmem:[#allocation3 + $0x40] sm:$0xff] %vm15, 0.0
    %41 = vst.msk [vmem:[#allocation3 + $0x48] sm:$0xff] %vm15, 0.0
    %42 = vst.msk [vmem:[#allocation3 + $0x50] sm:$0xff] %vm15, 0.0
    %43 = vst.msk [vmem:[#allocation3 + $0x58] sm:$0xff] %vm15, 0.0
    %44 = vst.msk [vmem:[#allocation3 + $0x60] sm:$0xff] %vm15, 0.0
    %45 = vst.msk [vmem:[#allocation3 + $0x68] sm:$0xff] %vm15, 0.0
    %46 = vst.msk [vmem:[#allocation3 + $0x70] sm:$0xff] %vm15, 0.0
    %47 = vst.msk [vmem:[#allocation3 + $0x78] sm:$0xff] %vm15, 0.0
    %48 = vst.msk [vmem:[#allocation4] sm:$0xff] %vm15, 0.0
    %49 = vst.msk [vmem:[#allocation4 + $0x8] sm:$0xff] %vm15, 0.0
    %50 = vst.msk [vmem:[#allocation4 + $0x10] sm:$0xff] %vm15, 0.0
    %51 = vst.msk [vmem:[#allocation4 + $0x18] sm:$0xff] %vm15, 0.0
    %52 = vst.msk [vmem:[#allocation4 + $0x20] sm:$0xff] %vm15, 0.0
    %53 = vst.msk [vmem:[#allocation4 + $0x28] sm:$0xff] %vm15, 0.0
    %54 = vst.msk [vmem:[#allocation4 + $0x30] sm:$0xff] %vm15, 0.0
    %55 = vst.msk [vmem:[#allocation4 + $0x38] sm:$0xff] %vm15, 0.0
    %56 = vst.msk [vmem:[#allocation4 + $0x40] sm:$0xff] %vm15, 0.0
    %57 = vst.msk [vmem:[#allocation4 + $0x48] sm:$0xff] %vm15, 0.0
    %58 = vst.msk [vmem:[#allocation4 + $0x50] sm:$0xff] %vm15, 0.0
    %59 = vst.msk [vmem:[#allocation4 + $0x58] sm:$0xff] %vm15, 0.0
    %60 = vst.msk [vmem:[#allocation4 + $0x60] sm:$0xff] %vm15, 0.0
    %61 = vst.msk [vmem:[#allocation4 + $0x68] sm:$0xff] %vm15, 0.0
    %62 = vst.msk [vmem:[#allocation4 + $0x70] sm:$0xff] %vm15, 0.0
    %63 = vst.msk [vmem:[#allocation4 + $0x78] sm:$0xff] %vm15, 0.0
  $region13: #{tpu_custom_call.1} parent=0 // pred_fallthru
    _
  %v64 = vld [vmem:[%s0] sm:$0xff]
  %v65 = vld [vmem:[%s0 + $0x8] sm:$0xff]
  %v66 = vld [vmem:[%s0 + $0x10] sm:$0xff]
  %v67 = vld [vmem:[%s0 + $0x18] sm:$0xff]
  %v68 = vld [vmem:[%s0 + $0x20] sm:$0xff]
  %v69 = vld [vmem:[%s0 + $0x28] sm:$0xff]
  %v70 = vld [vmem:[%s0 + $0x30] sm:$0xff]
  %v71 = vld [vmem:[%s0 + $0x38] sm:$0xff]
  %v72 = vld [vmem:[%s0 + $0x40] sm:$0xff]
  %v73 = vld [vmem:[%s0 + $0x48] sm:$0xff]
  %v74 = vld [vmem:[%s0 + $0x50] sm:$0xff]
  %v75 = vld [vmem:[%s0 + $0x58] sm:$0xff]
  %v76 = vld [vmem:[%s0 + $0x60] sm:$0xff]
  %v77 = vld [vmem:[%s0 + $0x68] sm:$0xff]
  %v78 = vld [vmem:[%s0 + $0x70] sm:$0xff]
  %v79 = vld [vmem:[%s0 + $0x78] sm:$0xff]
  %v80 = vld [vmem:[%s1] sm:$0xff]
  %v81 = vld [vmem:[%s1 + $0x8] sm:$0xff]
  %v82 = vld [vmem:[%s1 + $0x10] sm:$0xff]
  %v83 = vld [vmem:[%s1 + $0x18] sm:$0xff]
  %v84 = vld [vmem:[%s1 + $0x20] sm:$0xff]
  %v85 = vld [vmem:[%s1 + $0x28] sm:$0xff]
  %v86 = vld [vmem:[%s1 + $0x30] sm:$0xff]
  %v87 = vld [vmem:[%s1 + $0x38] sm:$0xff]
  %v88 = vld [vmem:[%s1 + $0x40] sm:$0xff]
  %v89 = vld [vmem:[%s1 + $0x48] sm:$0xff]
  %v90 = vld [vmem:[%s1 + $0x50] sm:$0xff]
  %v91 = vld [vmem:[%s1 + $0x58] sm:$0xff]
  %v92 = vld [vmem:[%s1 + $0x60] sm:$0xff]
  %v93 = vld [vmem:[%s1 + $0x68] sm:$0xff]
  %v94 = vld [vmem:[%s1 + $0x70] sm:$0xff]
  %v95 = vld [vmem:[%s1 + $0x78] sm:$0xff]
  %v96 = vld [vmem:[#allocation2] sm:$0xff]
  %v97 = vld [vmem:[#allocation2 + $0x8] sm:$0xff]
  %v98 = vld [vmem:[#allocation2 + $0x10] sm:$0xff]
  %v99 = vld [vmem:[#allocation2 + $0x18] sm:$0xff]
  %v100 = vld [vmem:[#allocation2 + $0x20] sm:$0xff]
  %v101 = vld [vmem:[#allocation2 + $0x28] sm:$0xff]
  %v102 = vld [vmem:[#allocation2 + $0x30] sm:$0xff]
  %v103 = vld [vmem:[#allocation2 + $0x38] sm:$0xff]
  %v104 = vld [vmem:[#allocation2 + $0x40] sm:$0xff]
  %v105 = vld [vmem:[#allocation2 + $0x48] sm:$0xff]
  %v106 = vld [vmem:[#allocation2 + $0x50] sm:$0xff]
  %v107 = vld [vmem:[#allocation2 + $0x58] sm:$0xff]
  %v108 = vld [vmem:[#allocation2 + $0x60] sm:$0xff]
  %v109 = vld [vmem:[#allocation2 + $0x68] sm:$0xff]
  %v110 = vld [vmem:[#allocation2 + $0x70] sm:$0xff]
  %v111 = vld [vmem:[#allocation2 + $0x78] sm:$0xff]
  %v112 = vmul.f32 %v64, %v80
  %v113 = vmul.f32 %v65, %v81
  %v114 = vmul.f32 %v66, %v82
  %v115 = vmul.f32 %v67, %v83
  %v116 = vmul.f32 %v68, %v84
  %v117 = vmul.f32 %v69, %v85
  %v118 = vmul.f32 %v70, %v86
  %v119 = vmul.f32 %v71, %v87
  %v120 = vmul.f32 %v72, %v88
  %v121 = vmul.f32 %v73, %v89
  %v122 = vmul.f32 %v74, %v90
  %v123 = vmul.f32 %v75, %v91
  %v124 = vmul.f32 %v76, %v92
  %v125 = vmul.f32 %v77, %v93
  %v126 = vmul.f32 %v78, %v94
  %v127 = vmul.f32 %v79, %v95
  %vm128 = vcmask 130048
  %v129 = vsel %vm128, %v112, 0.0
  %130 = vadd.xlane.f32.xlu0 %v129
  %v131 = vpop.xlane.xlu0 %130
  %v132 = vsel %vm128, %v113, 0.0
  %133 = vadd.xlane.f32.xlu0 %v132
  %v134 = vpop.xlane.xlu0 %133
  %v135 = vsel %vm128, %v114, 0.0
  %136 = vadd.xlane.f32.xlu0 %v135
  %v137 = vpop.xlane.xlu0 %136
  %v138 = vsel %vm128, %v115, 0.0
  %139 = vadd.xlane.f32.xlu0 %v138
  %v140 = vpop.xlane.xlu0 %139
  %v141 = vsel %vm128, %v116, 0.0
  %142 = vadd.xlane.f32.xlu0 %v141
  %v143 = vpop.xlane.xlu0 %142
  %v144 = vsel %vm128, %v117, 0.0
  %145 = vadd.xlane.f32.xlu0 %v144
  %v146 = vpop.xlane.xlu0 %145
  %v147 = vsel %vm128, %v118, 0.0
  %148 = vadd.xlane.f32.xlu0 %v147
  %v149 = vpop.xlane.xlu0 %148
  %v150 = vsel %vm128, %v119, 0.0
  %151 = vadd.xlane.f32.xlu0 %v150
  %v152 = vpop.xlane.xlu0 %151
  %v153 = vsel %vm128, %v120, 0.0
  %154 = vadd.xlane.f32.xlu0 %v153
  %v155 = vpop.xlane.xlu0 %154
  %v156 = vsel %vm128, %v121, 0.0
  %157 = vadd.xlane.f32.xlu0 %v156
  %v158 = vpop.xlane.xlu0 %157
  %v159 = vsel %vm128, %v122, 0.0
  %160 = vadd.xlane.f32.xlu0 %v159
  %v161 = vpop.xlane.xlu0 %160
  %v162 = vsel %vm128, %v123, 0.0
  %163 = vadd.xlane.f32.xlu0 %v162
  %v164 = vpop.xlane.xlu0 %163
  %v165 = vsel %vm128, %v124, 0.0
  %166 = vadd.xlane.f32.xlu0 %v165
  %v167 = vpop.xlane.xlu0 %166
  %v168 = vsel %vm128, %v125, 0.0
  %169 = vadd.xlane.f32.xlu0 %v168
  %v170 = vpop.xlane.xlu0 %169
  %v171 = vsel %vm128, %v126, 0.0
  %172 = vadd.xlane.f32.xlu0 %v171
  %v173 = vpop.xlane.xlu0 %172
  %v174 = vsel %vm128, %v127, 0.0
  %175 = vadd.xlane.f32.xlu0 %v174
  %v176 = vpop.xlane.xlu0 %175
  %v177 = vadd.f32 %v96, %v131
  %v178 = vadd.f32 %v97, %v134
  %v179 = vadd.f32 %v98, %v137
  %v180 = vadd.f32 %v99, %v140
  %v181 = vadd.f32 %v100, %v143
  %v182 = vadd.f32 %v101, %v146
  %v183 = vadd.f32 %v102, %v149
  %v184 = vadd.f32 %v103, %v152
  %v185 = vadd.f32 %v104, %v155
  %v186 = vadd.f32 %v105, %v158
  %v187 = vadd.f32 %v106, %v161
  %v188 = vadd.f32 %v107, %v164
  %v189 = vadd.f32 %v108, %v167
  %v190 = vadd.f32 %v109, %v170
  %v191 = vadd.f32 %v110, %v173
  %v192 = vadd.f32 %v111, %v176
  %vm193 = vcmask 7168
  %194 = vst.msk [vmem:[#allocation2] sm:$0xff] %vm193, %v177
  %195 = vst.msk [vmem:[#allocation2 + $0x8] sm:$0xff] %vm193, %v178
  %196 = vst.msk [vmem:[#allocation2 + $0x10] sm:$0xff] %vm193, %v179
  %197 = vst.msk [vmem:[#allocation2 + $0x18] sm:$0xff] %vm193, %v180
  %198 = vst.msk [vmem:[#allocation2 + $0x20] sm:$0xff] %vm193, %v181
  %199 = vst.msk [vmem:[#allocation2 + $0x28] sm:$0xff] %vm193, %v182
  %200 = vst.msk [vmem:[#allocation2 + $0x30] sm:$0xff] %vm193, %v183
  %201 = vst.msk [vmem:[#allocation2 + $0x38] sm:$0xff] %vm193, %v184
  %202 = vst.msk [vmem:[#allocation2 + $0x40] sm:$0xff] %vm193, %v185
  %203 = vst.msk [vmem:[#allocation2 + $0x48] sm:$0xff] %vm193, %v186
  %204 = vst.msk [vmem:[#allocation2 + $0x50] sm:$0xff] %vm193, %v187
  %205 = vst.msk [vmem:[#allocation2 + $0x58] sm:$0xff] %vm193, %v188
  %206 = vst.msk [vmem:[#allocation2 + $0x60] sm:$0xff] %vm193, %v189
  %207 = vst.msk [vmem:[#allocation2 + $0x68] sm:$0xff] %vm193, %v190
  %208 = vst.msk [vmem:[#allocation2 + $0x70] sm:$0xff] %vm193, %v191
  %209 = vst.msk [vmem:[#allocation2 + $0x78] sm:$0xff] %vm193, %v192
  %v210 = vld [vmem:[#allocation3] sm:$0xff]
  %v211 = vld [vmem:[#allocation3 + $0x8] sm:$0xff]
  %v212 = vld [vmem:[#allocation3 + $0x10] sm:$0xff]
  %v213 = vld [vmem:[#allocation3 + $0x18] sm:$0xff]
  %v214 = vld [vmem:[#allocation3 + $0x20] sm:$0xff]
  %v215 = vld [vmem:[#allocation3 + $0x28] sm:$0xff]
  %v216 = vld [vmem:[#allocation3 + $0x30] sm:$0xff]
  %v217 = vld [vmem:[#allocation3 + $0x38] sm:$0xff]
  %v218 = vld [vmem:[#allocation3 + $0x40] sm:$0xff]
  %v219 = vld [vmem:[#allocation3 + $0x48] sm:$0xff]
  %v220 = vld [vmem:[#allocation3 + $0x50] sm:$0xff]
  %v221 = vld [vmem:[#allocation3 + $0x58] sm:$0xff]
  %v222 = vld [vmem:[#allocation3 + $0x60] sm:$0xff]
  %v223 = vld [vmem:[#allocation3 + $0x68] sm:$0xff]
  %v224 = vld [vmem:[#allocation3 + $0x70] sm:$0xff]
  %v225 = vld [vmem:[#allocation3 + $0x78] sm:$0xff]
  %v226 = vmul.f32 %v80, %v80
  %v227 = vmul.f32 %v81, %v81
  %v228 = vmul.f32 %v82, %v82
  %v229 = vmul.f32 %v83, %v83
  %v230 = vmul.f32 %v84, %v84
  %v231 = vmul.f32 %v85, %v85
  %v232 = vmul.f32 %v86, %v86
  %v233 = vmul.f32 %v87, %v87
  %v234 = vmul.f32 %v88, %v88
  %v235 = vmul.f32 %v89, %v89
  %v236 = vmul.f32 %v90, %v90
  %v237 = vmul.f32 %v91, %v91
  %v238 = vmul.f32 %v92, %v92
  %v239 = vmul.f32 %v93, %v93
  %v240 = vmul.f32 %v94, %v94
  %v241 = vmul.f32 %v95, %v95
  %v242 = vsel %vm128, %v226, 0.0
  %243 = vadd.xlane.f32.xlu0 %v242
  %v244 = vpop.xlane.xlu0 %243
  %v245 = vsel %vm128, %v227, 0.0
  %246 = vadd.xlane.f32.xlu0 %v245
  %v247 = vpop.xlane.xlu0 %246
  %v248 = vsel %vm128, %v228, 0.0
  %249 = vadd.xlane.f32.xlu0 %v248
  %v250 = vpop.xlane.xlu0 %249
  %v251 = vsel %vm128, %v229, 0.0
  %252 = vadd.xlane.f32.xlu0 %v251
  %v253 = vpop.xlane.xlu0 %252
  %v254 = vsel %vm128, %v230, 0.0
  %255 = vadd.xlane.f32.xlu0 %v254
  %v256 = vpop.xlane.xlu0 %255
  %v257 = vsel %vm128, %v231, 0.0
  %258 = vadd.xlane.f32.xlu0 %v257
  %v259 = vpop.xlane.xlu0 %258
  %v260 = vsel %vm128, %v232, 0.0
  %261 = vadd.xlane.f32.xlu0 %v260
  %v262 = vpop.xlane.xlu0 %261
  %v263 = vsel %vm128, %v233, 0.0
  %264 = vadd.xlane.f32.xlu0 %v263
  %v265 = vpop.xlane.xlu0 %264
  %v266 = vsel %vm128, %v234, 0.0
  %267 = vadd.xlane.f32.xlu0 %v266
  %v268 = vpop.xlane.xlu0 %267
  %v269 = vsel %vm128, %v235, 0.0
  %270 = vadd.xlane.f32.xlu0 %v269
  %v271 = vpop.xlane.xlu0 %270
  %v272 = vsel %vm128, %v236, 0.0
  %273 = vadd.xlane.f32.xlu0 %v272
  %v274 = vpop.xlane.xlu0 %273
  %v275 = vsel %vm128, %v237, 0.0
  %276 = vadd.xlane.f32.xlu0 %v275
  %v277 = vpop.xlane.xlu0 %276
  %v278 = vsel %vm128, %v238, 0.0
  %279 = vadd.xlane.f32.xlu0 %v278
  %v280 = vpop.xlane.xlu0 %279
  %v281 = vsel %vm128, %v239, 0.0
  %282 = vadd.xlane.f32.xlu0 %v281
  %v283 = vpop.xlane.xlu0 %282
  %v284 = vsel %vm128, %v240, 0.0
  %285 = vadd.xlane.f32.xlu0 %v284
  %v286 = vpop.xlane.xlu0 %285
  %v287 = vsel %vm128, %v241, 0.0
  %288 = vadd.xlane.f32.xlu0 %v287
  %v289 = vpop.xlane.xlu0 %288
  %v290 = vadd.f32 %v210, %v244
  %v291 = vadd.f32 %v211, %v247
  %v292 = vadd.f32 %v212, %v250
  %v293 = vadd.f32 %v213, %v253
  %v294 = vadd.f32 %v214, %v256
  %v295 = vadd.f32 %v215, %v259
  %v296 = vadd.f32 %v216, %v262
  %v297 = vadd.f32 %v217, %v265
  %v298 = vadd.f32 %v218, %v268
  %v299 = vadd.f32 %v219, %v271
  %v300 = vadd.f32 %v220, %v274
  %v301 = vadd.f32 %v221, %v277
  %v302 = vadd.f32 %v222, %v280
  %v303 = vadd.f32 %v223, %v283
  %v304 = vadd.f32 %v224, %v286
  %v305 = vadd.f32 %v225, %v289
  %306 = vst.msk [vmem:[#allocation3] sm:$0xff] %vm193, %v290
  %307 = vst.msk [vmem:[#allocation3 + $0x8] sm:$0xff] %vm193, %v291
  %308 = vst.msk [vmem:[#allocation3 + $0x10] sm:$0xff] %vm193, %v292
  %309 = vst.msk [vmem:[#allocation3 + $0x18] sm:$0xff] %vm193, %v293
  %310 = vst.msk [vmem:[#allocation3 + $0x20] sm:$0xff] %vm193, %v294
  %311 = vst.msk [vmem:[#allocation3 + $0x28] sm:$0xff] %vm193, %v295
  %312 = vst.msk [vmem:[#allocation3 + $0x30] sm:$0xff] %vm193, %v296
  %313 = vst.msk [vmem:[#allocation3 + $0x38] sm:$0xff] %vm193, %v297
  %314 = vst.msk [vmem:[#allocation3 + $0x40] sm:$0xff] %vm193, %v298
  %315 = vst.msk [vmem:[#allocation3 + $0x48] sm:$0xff] %vm193, %v299
  %316 = vst.msk [vmem:[#allocation3 + $0x50] sm:$0xff] %vm193, %v300
  %317 = vst.msk [vmem:[#allocation3 + $0x58] sm:$0xff] %vm193, %v301
  %318 = vst.msk [vmem:[#allocation3 + $0x60] sm:$0xff] %vm193, %v302
  %319 = vst.msk [vmem:[#allocation3 + $0x68] sm:$0xff] %vm193, %v303
  %320 = vst.msk [vmem:[#allocation3 + $0x70] sm:$0xff] %vm193, %v304
  %321 = vst.msk [vmem:[#allocation3 + $0x78] sm:$0xff] %vm193, %v305
  %v322 = vld [vmem:[#allocation4] sm:$0xff]
  %v323 = vld [vmem:[#allocation4 + $0x8] sm:$0xff]
  %v324 = vld [vmem:[#allocation4 + $0x10] sm:$0xff]
  %v325 = vld [vmem:[#allocation4 + $0x18] sm:$0xff]
  %v326 = vld [vmem:[#allocation4 + $0x20] sm:$0xff]
  %v327 = vld [vmem:[#allocation4 + $0x28] sm:$0xff]
  %v328 = vld [vmem:[#allocation4 + $0x30] sm:$0xff]
  %v329 = vld [vmem:[#allocation4 + $0x38] sm:$0xff]
  %v330 = vld [vmem:[#allocation4 + $0x40] sm:$0xff]
  %v331 = vld [vmem:[#allocation4 + $0x48] sm:$0xff]
  %v332 = vld [vmem:[#allocation4 + $0x50] sm:$0xff]
  %v333 = vld [vmem:[#allocation4 + $0x58] sm:$0xff]
  %v334 = vld [vmem:[#allocation4 + $0x60] sm:$0xff]
  %v335 = vld [vmem:[#allocation4 + $0x68] sm:$0xff]
  %v336 = vld [vmem:[#allocation4 + $0x70] sm:$0xff]
  %v337 = vld [vmem:[#allocation4 + $0x78] sm:$0xff]
  %v338 = vmul.f32 %v64, %v64
  %v339 = vmul.f32 %v65, %v65
  %v340 = vmul.f32 %v66, %v66
  %v341 = vmul.f32 %v67, %v67
  %v342 = vmul.f32 %v68, %v68
  %v343 = vmul.f32 %v69, %v69
  %v344 = vmul.f32 %v70, %v70
  %v345 = vmul.f32 %v71, %v71
  %v346 = vmul.f32 %v72, %v72
  %v347 = vmul.f32 %v73, %v73
  %v348 = vmul.f32 %v74, %v74
  %v349 = vmul.f32 %v75, %v75
  %v350 = vmul.f32 %v76, %v76
  %v351 = vmul.f32 %v77, %v77
  %v352 = vmul.f32 %v78, %v78
  %v353 = vmul.f32 %v79, %v79
  %v354 = vsel %vm128, %v338, 0.0
  %355 = vadd.xlane.f32.xlu0 %v354
  %v356 = vpop.xlane.xlu0 %355
  %v357 = vsel %vm128, %v339, 0.0
  %358 = vadd.xlane.f32.xlu0 %v357
  %v359 = vpop.xlane.xlu0 %358
  %v360 = vsel %vm128, %v340, 0.0
  %361 = vadd.xlane.f32.xlu0 %v360
  %v362 = vpop.xlane.xlu0 %361
  %v363 = vsel %vm128, %v341, 0.0
  %364 = vadd.xlane.f32.xlu0 %v363
  %v365 = vpop.xlane.xlu0 %364
  %v366 = vsel %vm128, %v342, 0.0
  %367 = vadd.xlane.f32.xlu0 %v366
  %v368 = vpop.xlane.xlu0 %367
  %v369 = vsel %vm128, %v343, 0.0
  %370 = vadd.xlane.f32.xlu0 %v369
  %v371 = vpop.xlane.xlu0 %370
  %v372 = vsel %vm128, %v344, 0.0
  %373 = vadd.xlane.f32.xlu0 %v372
  %v374 = vpop.xlane.xlu0 %373
  %v375 = vsel %vm128, %v345, 0.0
  %376 = vadd.xlane.f32.xlu0 %v375
  %v377 = vpop.xlane.xlu0 %376
  %v378 = vsel %vm128, %v346, 0.0
  %379 = vadd.xlane.f32.xlu0 %v378
  %v380 = vpop.xlane.xlu0 %379
  %v381 = vsel %vm128, %v347, 0.0
  %382 = vadd.xlane.f32.xlu0 %v381
  %v383 = vpop.xlane.xlu0 %382
  %v384 = vsel %vm128, %v348, 0.0
  %385 = vadd.xlane.f32.xlu0 %v384
  %v386 = vpop.xlane.xlu0 %385
  %v387 = vsel %vm128, %v349, 0.0
  %388 = vadd.xlane.f32.xlu0 %v387
  %v389 = vpop.xlane.xlu0 %388
  %v390 = vsel %vm128, %v350, 0.0
  %391 = vadd.xlane.f32.xlu0 %v390
  %v392 = vpop.xlane.xlu0 %391
  %v393 = vsel %vm128, %v351, 0.0
  %394 = vadd.xlane.f32.xlu0 %v393
  %v395 = vpop.xlane.xlu0 %394
  %v396 = vsel %vm128, %v352, 0.0
  %397 = vadd.xlane.f32.xlu0 %v396
  %v398 = vpop.xlane.xlu0 %397
  %v399 = vsel %vm128, %v353, 0.0
  %400 = vadd.xlane.f32.xlu0 %v399
  %v401 = vpop.xlane.xlu0 %400
  %v402 = vadd.f32 %v322, %v356
  %v403 = vadd.f32 %v323, %v359
  %v404 = vadd.f32 %v324, %v362
  %v405 = vadd.f32 %v325, %v365
  %v406 = vadd.f32 %v326, %v368
  %v407 = vadd.f32 %v327, %v371
  %v408 = vadd.f32 %v328, %v374
  %v409 = vadd.f32 %v329, %v377
  %v410 = vadd.f32 %v330, %v380
  %v411 = vadd.f32 %v331, %v383
  %v412 = vadd.f32 %v332, %v386
  %v413 = vadd.f32 %v333, %v389
  %v414 = vadd.f32 %v334, %v392
  %v415 = vadd.f32 %v335, %v395
  %v416 = vadd.f32 %v336, %v398
  %v417 = vadd.f32 %v337, %v401
  %418 = vst.msk [vmem:[#allocation4] sm:$0xff] %vm193, %v402
  %419 = vst.msk [vmem:[#allocation4 + $0x8] sm:$0xff] %vm193, %v403
  %420 = vst.msk [vmem:[#allocation4 + $0x10] sm:$0xff] %vm193, %v404
  %421 = vst.msk [vmem:[#allocation4 + $0x18] sm:$0xff] %vm193, %v405
  %422 = vst.msk [vmem:[#allocation4 + $0x20] sm:$0xff] %vm193, %v406
  %423 = vst.msk [vmem:[#allocation4 + $0x28] sm:$0xff] %vm193, %v407
  %424 = vst.msk [vmem:[#allocation4 + $0x30] sm:$0xff] %vm193, %v408
  %425 = vst.msk [vmem:[#allocation4 + $0x38] sm:$0xff] %vm193, %v409
  %426 = vst.msk [vmem:[#allocation4 + $0x40] sm:$0xff] %vm193, %v410
  %427 = vst.msk [vmem:[#allocation4 + $0x48] sm:$0xff] %vm193, %v411
  %428 = vst.msk [vmem:[#allocation4 + $0x50] sm:$0xff] %vm193, %v412
  %429 = vst.msk [vmem:[#allocation4 + $0x58] sm:$0xff] %vm193, %v413
  %430 = vst.msk [vmem:[#allocation4 + $0x60] sm:$0xff] %vm193, %v414
  %431 = vst.msk [vmem:[#allocation4 + $0x68] sm:$0xff] %vm193, %v415
  %432 = vst.msk [vmem:[#allocation4 + $0x70] sm:$0xff] %vm193, %v416
  %433 = vst.msk [vmem:[#allocation4 + $0x78] sm:$0xff] %vm193, %v417
  // Predicated region
  $region14: #{tpu_custom_call.1} parent=0 // pred_check
    %p434 = pneg %p11
  $region15: #{tpu_custom_call.1} parent=0 // pred_check_branch
    %436 = sbr.rel (%p434) target = $region17
  $region16: #{tpu_custom_call.1} parent=0 // pred_region
    %v437 = vld [vmem:[#allocation2] sm:$0xff]
    %v438 = vld [vmem:[#allocation2 + $0x8] sm:$0xff]
    %v439 = vld [vmem:[#allocation2 + $0x10] sm:$0xff]
    %v440 = vld [vmem:[#allocation2 + $0x18] sm:$0xff]
    %v441 = vld [vmem:[#allocation2 + $0x20] sm:$0xff]
    %v442 = vld [vmem:[#allocation2 + $0x28] sm:$0xff]
    %v443 = vld [vmem:[#allocation2 + $0x30] sm:$0xff]
    %v444 = vld [vmem:[#allocation2 + $0x38] sm:$0xff]
    %v445 = vld [vmem:[#allocation2 + $0x40] sm:$0xff]
    %v446 = vld [vmem:[#allocation2 + $0x48] sm:$0xff]
    %v447 = vld [vmem:[#allocation2 + $0x50] sm:$0xff]
    %v448 = vld [vmem:[#allocation2 + $0x58] sm:$0xff]
    %v449 = vld [vmem:[#allocation2 + $0x60] sm:$0xff]
    %v450 = vld [vmem:[#allocation2 + $0x68] sm:$0xff]
    %v451 = vld [vmem:[#allocation2 + $0x70] sm:$0xff]
    %v452 = vld [vmem:[#allocation2 + $0x78] sm:$0xff]
    %v453 = vld [vmem:[#allocation3] sm:$0xff]
    %v454 = vld [vmem:[#allocation3 + $0x8] sm:$0xff]
    %v455 = vld [vmem:[#allocation3 + $0x10] sm:$0xff]
    %v456 = vld [vmem:[#allocation3 + $0x18] sm:$0xff]
    %v457 = vld [vmem:[#allocation3 + $0x20] sm:$0xff]
    %v458 = vld [vmem:[#allocation3 + $0x28] sm:$0xff]
    %v459 = vld [vmem:[#allocation3 + $0x30] sm:$0xff]
    %v460 = vld [vmem:[#allocation3 + $0x38] sm:$0xff]
    %v461 = vld [vmem:[#allocation3 + $0x40] sm:$0xff]
    %v462 = vld [vmem:[#allocation3 + $0x48] sm:$0xff]
    %v463 = vld [vmem:[#allocation3 + $0x50] sm:$0xff]
    %v464 = vld [vmem:[#allocation3 + $0x58] sm:$0xff]
    %v465 = vld [vmem:[#allocation3 + $0x60] sm:$0xff]
    %v466 = vld [vmem:[#allocation3 + $0x68] sm:$0xff]
    %v467 = vld [vmem:[#allocation3 + $0x70] sm:$0xff]
    %v468 = vld [vmem:[#allocation3 + $0x78] sm:$0xff]
    %v469 = vld [vmem:[#allocation4] sm:$0xff]
    %v470 = vld [vmem:[#allocation4 + $0x8] sm:$0xff]
    %v471 = vld [vmem:[#allocation4 + $0x10] sm:$0xff]
    %v472 = vld [vmem:[#allocation4 + $0x18] sm:$0xff]
    %v473 = vld [vmem:[#allocation4 + $0x20] sm:$0xff]
    %v474 = vld [vmem:[#allocation4 + $0x28] sm:$0xff]
    %v475 = vld [vmem:[#allocation4 + $0x30] sm:$0xff]
    %v476 = vld [vmem:[#allocation4 + $0x38] sm:$0xff]
    %v477 = vld [vmem:[#allocation4 + $0x40] sm:$0xff]
    %v478 = vld [vmem:[#allocation4 + $0x48] sm:$0xff]
    %v479 = vld [vmem:[#allocation4 + $0x50] sm:$0xff]
    %v480 = vld [vmem:[#allocation4 + $0x58] sm:$0xff]
    %v481 = vld [vmem:[#allocation4 + $0x60] sm:$0xff]
    %v482 = vld [vmem:[#allocation4 + $0x68] sm:$0xff]
    %v483 = vld [vmem:[#allocation4 + $0x70] sm:$0xff]
    %v484 = vld [vmem:[#allocation4 + $0x78] sm:$0xff]
    %v485 = vadd.f32 %v453, 1e-08
    %v486 = vadd.f32 %v454, 1e-08
    %v487 = vadd.f32 %v455, 1e-08
    %v488 = vadd.f32 %v456, 1e-08
    %v489 = vadd.f32 %v457, 1e-08
    %v490 = vadd.f32 %v458, 1e-08
    %v491 = vadd.f32 %v459, 1e-08
    %v492 = vadd.f32 %v460, 1e-08
    %v493 = vadd.f32 %v461, 1e-08
    %v494 = vadd.f32 %v462, 1e-08
    %v495 = vadd.f32 %v463, 1e-08
    %v496 = vadd.f32 %v464, 1e-08
    %v497 = vadd.f32 %v465, 1e-08
    %v498 = vadd.f32 %v466, 1e-08
    %v499 = vadd.f32 %v467, 1e-08
    %v500 = vadd.f32 %v468, 1e-08
    %v501 = vrcp.pop %v485
    %v502 = vmul.f32 %v437, %v501
    %v503 = vrcp.pop %v486
    %v504 = vmul.f32 %v438, %v503
    %v505 = vrcp.pop %v487
    %v506 = vmul.f32 %v439, %v505
    %v507 = vrcp.pop %v488
    %v508 = vmul.f32 %v440, %v507
    %v509 = vrcp.pop %v489
    %v510 = vmul.f32 %v441, %v509
    %v511 = vrcp.pop %v490
    %v512 = vmul.f32 %v442, %v511
    %v513 = vrcp.pop %v491
    %v514 = vmul.f32 %v443, %v513
    %v515 = vrcp.pop %v492
    %v516 = vmul.f32 %v444, %v515
    %v517 = vrcp.pop %v493
    %v518 = vmul.f32 %v445, %v517
    %v519 = vrcp.pop %v494
    %v520 = vmul.f32 %v446, %v519
    %v521 = vrcp.pop %v495
    %v522 = vmul.f32 %v447, %v521
    %v523 = vrcp.pop %v496
    %v524 = vmul.f32 %v448, %v523
    %v525 = vrcp.pop %v497
    %v526 = vmul.f32 %v449, %v525
    %v527 = vrcp.pop %v498
    %v528 = vmul.f32 %v450, %v527
    %v529 = vrcp.pop %v499
    %v530 = vmul.f32 %v451, %v529
    %v531 = vrcp.pop %v500
    %v532 = vmul.f32 %v452, %v531
    %v533 = vmul.f32 %v502, %v502
    %v534 = vmul.f32 %v504, %v504
    %v535 = vmul.f32 %v506, %v506
    %v536 = vmul.f32 %v508, %v508
    %v537 = vmul.f32 %v510, %v510
    %v538 = vmul.f32 %v512, %v512
    %v539 = vmul.f32 %v514, %v514
    %v540 = vmul.f32 %v516, %v516
    %v541 = vmul.f32 %v518, %v518
    %v542 = vmul.f32 %v520, %v520
    %v543 = vmul.f32 %v522, %v522
    %v544 = vmul.f32 %v524, %v524
    %v545 = vmul.f32 %v526, %v526
    %v546 = vmul.f32 %v528, %v528
    %v547 = vmul.f32 %v530, %v530
    %v548 = vmul.f32 %v532, %v532
    %v549 = vmul.f32 %v533, %v453
    %v550 = vmul.f32 %v534, %v454
    %v551 = vmul.f32 %v535, %v455
    %v552 = vmul.f32 %v536, %v456
    %v553 = vmul.f32 %v537, %v457
    %v554 = vmul.f32 %v538, %v458
    %v555 = vmul.f32 %v539, %v459
    %v556 = vmul.f32 %v540, %v460
    %v557 = vmul.f32 %v541, %v461
    %v558 = vmul.f32 %v542, %v462
    %v559 = vmul.f32 %v543, %v463
    %v560 = vmul.f32 %v544, %v464
    %v561 = vmul.f32 %v545, %v465
    %v562 = vmul.f32 %v546, %v466
    %v563 = vmul.f32 %v547, %v467
    %v564 = vmul.f32 %v548, %v468
    %v565 = vmul.f32 %v502, 2.0
    %v566 = vmul.f32 %v504, 2.0
    %v567 = vmul.f32 %v506, 2.0
    %v568 = vmul.f32 %v508, 2.0
    %v569 = vmul.f32 %v510, 2.0
    %v570 = vmul.f32 %v512, 2.0
    %v571 = vmul.f32 %v514, 2.0
    %v572 = vmul.f32 %v516, 2.0
    %v573 = vmul.f32 %v518, 2.0
    %v574 = vmul.f32 %v520, 2.0
    %v575 = vmul.f32 %v522, 2.0
    %v576 = vmul.f32 %v524, 2.0
    %v577 = vmul.f32 %v526, 2.0
    %v578 = vmul.f32 %v528, 2.0
    %v579 = vmul.f32 %v530, 2.0
    %v580 = vmul.f32 %v532, 2.0
    %v581 = vmul.f32 %v565, %v437
    %v582 = vmul.f32 %v566, %v438
    %v583 = vmul.f32 %v567, %v439
    %v584 = vmul.f32 %v568, %v440
    %v585 = vmul.f32 %v569, %v441
    %v586 = vmul.f32 %v570, %v442
    %v587 = vmul.f32 %v571, %v443
    %v588 = vmul.f32 %v572, %v444
    %v589 = vmul.f32 %v573, %v445
    %v590 = vmul.f32 %v574, %v446
    %v591 = vmul.f32 %v575, %v447
    %v592 = vmul.f32 %v576, %v448
    %v593 = vmul.f32 %v577, %v449
    %v594 = vmul.f32 %v578, %v450
    %v595 = vmul.f32 %v579, %v451
    %v596 = vmul.f32 %v580, %v452
    %v597 = vsub.f32 %v469, %v581
    %v598 = vsub.f32 %v470, %v582
    %v599 = vsub.f32 %v471, %v583
    %v600 = vsub.f32 %v472, %v584
    %v601 = vsub.f32 %v473, %v585
    %v602 = vsub.f32 %v474, %v586
    %v603 = vsub.f32 %v475, %v587
    %v604 = vsub.f32 %v476, %v588
    %v605 = vsub.f32 %v477, %v589
    %v606 = vsub.f32 %v478, %v590
    %v607 = vsub.f32 %v479, %v591
    %v608 = vsub.f32 %v480, %v592
    %v609 = vsub.f32 %v481, %v593
    %v610 = vsub.f32 %v482, %v594
    %v611 = vsub.f32 %v483, %v595
    %v612 = vsub.f32 %v484, %v596
    %v613 = vadd.f32 %v597, %v549
    %v614 = vadd.f32 %v598, %v550
    %v615 = vadd.f32 %v599, %v551
    %v616 = vadd.f32 %v600, %v552
    %v617 = vadd.f32 %v601, %v553
    %v618 = vadd.f32 %v602, %v554
    %v619 = vadd.f32 %v603, %v555
    %v620 = vadd.f32 %v604, %v556
    %v621 = vadd.f32 %v605, %v557
    %v622 = vadd.f32 %v606, %v558
    %v623 = vadd.f32 %v607, %v559
    %v624 = vadd.f32 %v608, %v560
    %v625 = vadd.f32 %v609, %v561
    %v626 = vadd.f32 %v610, %v562
    %v627 = vadd.f32 %v611, %v563
    %v628 = vadd.f32 %v612, %v564
    %v629 = vmax.f32 %v613, 0.0
    %v630 = vmax.f32 %v614, 0.0
    %v631 = vmax.f32 %v615, 0.0
    %v632 = vmax.f32 %v616, 0.0
    %v633 = vmax.f32 %v617, 0.0
    %v634 = vmax.f32 %v618, 0.0
    %v635 = vmax.f32 %v619, 0.0
    %v636 = vmax.f32 %v620, 0.0
    %v637 = vmax.f32 %v621, 0.0
    %v638 = vmax.f32 %v622, 0.0
    %v639 = vmax.f32 %v623, 0.0
    %v640 = vmax.f32 %v624, 0.0
    %v641 = vmax.f32 %v625, 0.0
    %v642 = vmax.f32 %v626, 0.0
    %v643 = vmax.f32 %v627, 0.0
    %v644 = vmax.f32 %v628, 0.0
    %v645 = vadd.f32 %v549, 1e-08
    %v646 = vadd.f32 %v550, 1e-08
    %v647 = vadd.f32 %v551, 1e-08
    %v648 = vadd.f32 %v552, 1e-08
    %v649 = vadd.f32 %v553, 1e-08
    %v650 = vadd.f32 %v554, 1e-08
    %v651 = vadd.f32 %v555, 1e-08
    %v652 = vadd.f32 %v556, 1e-08
    %v653 = vadd.f32 %v557, 1e-08
    %v654 = vadd.f32 %v558, 1e-08
    %v655 = vadd.f32 %v559, 1e-08
    %v656 = vadd.f32 %v560, 1e-08
    %v657 = vadd.f32 %v561, 1e-08
    %v658 = vadd.f32 %v562, 1e-08
    %v659 = vadd.f32 %v563, 1e-08
    %v660 = vadd.f32 %v564, 1e-08
    %v661 = vlog2.pop %v645
    %v662 = vmul.f32 %v661, 0.6931472
    %v663 = vlog2.pop %v646
    %v664 = vmul.f32 %v663, 0.6931472
    %v665 = vlog2.pop %v647
    %v666 = vmul.f32 %v665, 0.6931472
    %v667 = vlog2.pop %v648
    %v668 = vmul.f32 %v667, 0.6931472
    %v669 = vlog2.pop %v649
    %v670 = vmul.f32 %v669, 0.6931472
    %v671 = vlog2.pop %v650
    %v672 = vmul.f32 %v671, 0.6931472
    %v673 = vlog2.pop %v651
    %v674 = vmul.f32 %v673, 0.6931472
    %v675 = vlog2.pop %v652
    %v676 = vmul.f32 %v675, 0.6931472
    %v677 = vlog2.pop %v653
    %v678 = vmul.f32 %v677, 0.6931472
    %v679 = vlog2.pop %v654
    %v680 = vmul.f32 %v679, 0.6931472
    %v681 = vlog2.pop %v655
    %v682 = vmul.f32 %v681, 0.6931472
    %v683 = vlog2.pop %v656
    %v684 = vmul.f32 %v683, 0.6931472
    %v685 = vlog2.pop %v657
    %v686 = vmul.f32 %v685, 0.6931472
    %v687 = vlog2.pop %v658
    %v688 = vmul.f32 %v687, 0.6931472
    %v689 = vlog2.pop %v659
    %v690 = vmul.f32 %v689, 0.6931472
    %v691 = vlog2.pop %v660
    %v692 = vmul.f32 %v691, 0.6931472
    %v693 = vadd.f32 %v629, 1e-08
    %v694 = vadd.f32 %v630, 1e-08
    %v695 = vadd.f32 %v631, 1e-08
    %v696 = vadd.f32 %v632, 1e-08
    %v697 = vadd.f32 %v633, 1e-08
    %v698 = vadd.f32 %v634, 1e-08
    %v699 = vadd.f32 %v635, 1e-08
    %v700 = vadd.f32 %v636, 1e-08
    %v701 = vadd.f32 %v637, 1e-08
    %v702 = vadd.f32 %v638, 1e-08
    %v703 = vadd.f32 %v639, 1e-08
    %v704 = vadd.f32 %v640, 1e-08
    %v705 = vadd.f32 %v641, 1e-08
    %v706 = vadd.f32 %v642, 1e-08
    %v707 = vadd.f32 %v643, 1e-08
    %v708 = vadd.f32 %v644, 1e-08
    %v709 = vlog2.pop %v693
    %v710 = vmul.f32 %v709, 0.6931472
    %v711 = vlog2.pop %v694
    %v712 = vmul.f32 %v711, 0.6931472
    %v713 = vlog2.pop %v695
    %v714 = vmul.f32 %v713, 0.6931472
    %v715 = vlog2.pop %v696
    %v716 = vmul.f32 %v715, 0.6931472
    %v717 = vlog2.pop %v697
    %v718 = vmul.f32 %v717, 0.6931472
    %v719 = vlog2.pop %v698
    %v720 = vmul.f32 %v719, 0.6931472
    %v721 = vlog2.pop %v699
    %v722 = vmul.f32 %v721, 0.6931472
    %v723 = vlog2.pop %v700
    %v724 = vmul.f32 %v723, 0.6931472
    %v725 = vlog2.pop %v701
    %v726 = vmul.f32 %v725, 0.6931472
    %v727 = vlog2.pop %v702
    %v728 = vmul.f32 %v727, 0.6931472
    %v729 = vlog2.pop %v703
    %v730 = vmul.f32 %v729, 0.6931472
    %v731 = vlog2.pop %v704
    %v732 = vmul.f32 %v731, 0.6931472
    %v733 = vlog2.pop %v705
    %v734 = vmul.f32 %v733, 0.6931472
    %v735 = vlog2.pop %v706
    %v736 = vmul.f32 %v735, 0.6931472
    %v737 = vlog2.pop %v707
    %v738 = vmul.f32 %v737, 0.6931472
    %v739 = vlog2.pop %v708
    %v740 = vmul.f32 %v739, 0.6931472
    %v741 = vsub.f32 %v662, %v710
    %v742 = vsub.f32 %v664, %v712
    %v743 = vsub.f32 %v666, %v714
    %v744 = vsub.f32 %v668, %v716
    %v745 = vsub.f32 %v670, %v718
    %v746 = vsub.f32 %v672, %v720
    %v747 = vsub.f32 %v674, %v722
    %v748 = vsub.f32 %v676, %v724
    %v749 = vsub.f32 %v678, %v726
    %v750 = vsub.f32 %v680, %v728
    %v751 = vsub.f32 %v682, %v730
    %v752 = vsub.f32 %v684, %v732
    %v753 = vsub.f32 %v686, %v734
    %v754 = vsub.f32 %v688, %v736
    %v755 = vsub.f32 %v690, %v738
    %v756 = vsub.f32 %v692, %v740
    %v757 = vmul.f32 %v741, 4.3429446
    %v758 = vmul.f32 %v742, 4.3429446
    %v759 = vmul.f32 %v743, 4.3429446
    %v760 = vmul.f32 %v744, 4.3429446
    %v761 = vmul.f32 %v745, 4.3429446
    %v762 = vmul.f32 %v746, 4.3429446
    %v763 = vmul.f32 %v747, 4.3429446
    %v764 = vmul.f32 %v748, 4.3429446
    %v765 = vmul.f32 %v749, 4.3429446
    %v766 = vmul.f32 %v750, 4.3429446
    %v767 = vmul.f32 %v751, 4.3429446
    %v768 = vmul.f32 %v752, 4.3429446
    %v769 = vmul.f32 %v753, 4.3429446
    %v770 = vmul.f32 %v754, 4.3429446
    %v771 = vmul.f32 %v755, 4.3429446
    %v772 = vmul.f32 %v756, 4.3429446
    %773 = vst.msk [vmem:[%s2] sm:$0xff] %vm193, %v757
    %774 = vst.msk [vmem:[%s2 + $0x8] sm:$0xff] %vm193, %v758
    %775 = vst.msk [vmem:[%s2 + $0x10] sm:$0xff] %vm193, %v759
    %776 = vst.msk [vmem:[%s2 + $0x18] sm:$0xff] %vm193, %v760
    %777 = vst.msk [vmem:[%s2 + $0x20] sm:$0xff] %vm193, %v761
    %778 = vst.msk [vmem:[%s2 + $0x28] sm:$0xff] %vm193, %v762
    %779 = vst.msk [vmem:[%s2 + $0x30] sm:$0xff] %vm193, %v763
    %780 = vst.msk [vmem:[%s2 + $0x38] sm:$0xff] %vm193, %v764
    %781 = vst.msk [vmem:[%s2 + $0x40] sm:$0xff] %vm193, %v765
    %782 = vst.msk [vmem:[%s2 + $0x48] sm:$0xff] %vm193, %v766
    %783 = vst.msk [vmem:[%s2 + $0x50] sm:$0xff] %vm193, %v767
    %784 = vst.msk [vmem:[%s2 + $0x58] sm:$0xff] %vm193, %v768
    %785 = vst.msk [vmem:[%s2 + $0x60] sm:$0xff] %vm193, %v769
    %786 = vst.msk [vmem:[%s2 + $0x68] sm:$0xff] %vm193, %v770
    %787 = vst.msk [vmem:[%s2 + $0x70] sm:$0xff] %vm193, %v771
    %788 = vst.msk [vmem:[%s2 + $0x78] sm:$0xff] %vm193, %v772
  $region17: #{tpu_custom_call.1} parent=0 // pred_fallthru
    _
  // Predicated region
  $region18: #{tpu_custom_call.1} parent=0 // pred_check
    _
  $region19: #{tpu_custom_call.1} parent=0 // pred_check_branch
    %790 = sbr.rel (0) target = $region21
  $region20: #{tpu_custom_call.1} parent=0 // pred_region
    _
  $region21: #{tpu_custom_call.1} parent=0 // pred_fallthru
    _
  // Predicated region
  $region22: #{tpu_custom_call.1} parent=0 // pred_check
    _
  $region23: #{tpu_custom_call.1} parent=0 // pred_check_branch
    %792 = sbr.rel (0) target = $region25
  $region24: #{tpu_custom_call.1} parent=0 // pred_region
    _
  $region25: #{tpu_custom_call.1} parent=0 // pred_fallthru
    _

</llo_original>
